<compile_context>
chip_gen: v5e
topology: v5e:2x2
jax: 0.10.0
libtpu: 0.0.40
codegen_flags: <defaults>
</compile_context>

<pallas_src>
import functools

import jax
import jax.numpy as jnp
from jax.experimental import pallas as pl
from jax.experimental.pallas import tpu as pltpu

# ---- deterministic "module init" (synthetic train_labels / num_poss_labels) ----
TRAIN_LABELS = [[3, 1, 7], [2], [0, 5], [4, 4, 1, 6]]   # len(l)==1 for dim 1 -> unused
NUM_POSS_LABELS = [8, 4, 6, 8]
USED_DIMS = tuple(i for i, l in enumerate(TRAIN_LABELS) if len(l) > 1)   # (0, 2, 3)
USED_LENS = tuple(len(TRAIN_LABELS[i]) for i in USED_DIMS)               # (3, 2, 4)
OUT_DIM = sum(USED_LENS)                                                 # 9


def _onehot_kernel(x_ref, labels_ref, o_ref, *, used_dims, used_lens):
    """out_t[c, n] = float(x_t[dim(c), n] == label(c)) for the current N-tile.

    x_ref:      (D, TILE_N)      int32   (feature-major sample tile)
    labels_ref: (OUT_DIM, 1)     int32   (resident label column)
    o_ref:      (OUT_DIM, TILE_N) float32
    """
    x = x_ref[...]            # (D, TILE_N)
    labels = labels_ref[...]  # (OUT_DIM, 1)
    pieces = []
    off = 0
    for d, L in zip(used_dims, used_lens):   # static unroll, D is tiny (trace-time)
        # (1, TILE_N) == (L, 1) broadcasts to an (L, TILE_N) slab for feature d.
        pieces.append((x[d:d + 1, :] == labels[off:off + L, :]).astype(jnp.float32))
        off += L
    # Sublane-axis concat of a few tiny slabs, then one full-width lane-dense store.
    o_ref[...] = jnp.concatenate(pieces, axis=0)


def one_hot_encode(x, labels_flat, *, tile_n=512):
    """x: (N, D) int32, labels_flat: (OUT_DIM,) int32  ->  (N, OUT_DIM) float32."""
    N, D = x.shape
    out_dim = int(labels_flat.shape[0])

    # Lane tile: multiple of 128, clamped so tiny N doesn't over-pad, large N gets
    # several grid steps (keeps both v7x TensorCores busy via the parallel axis).
    tile_n = max(128, (int(tile_n) // 128) * 128)
    tile_n = min(tile_n, pl.cdiv(N, 128) * 128)
    n_pad = pl.cdiv(N, tile_n) * tile_n

    # Feature-major layout; pad the sample axis with -1 (matches no label -> 0.0,
    # and the padded columns are sliced off below anyway).
    x_t = jnp.pad(x.T.astype(jnp.int32), ((0, 0), (0, n_pad - N)), constant_values=-1)
    labels_col = labels_flat.astype(jnp.int32).reshape(out_dim, 1)

    kernel = functools.partial(_onehot_kernel, used_dims=USED_DIMS, used_lens=USED_LENS)
    out_t = pl.pallas_call(
        kernel,
        out_shape=jax.ShapeDtypeStruct((out_dim, n_pad), jnp.float32),
        grid_spec=pltpu.PrefetchScalarGridSpec(
            num_scalar_prefetch=0,
            grid=(n_pad // tile_n,),
            in_specs=[
                pl.BlockSpec((D, tile_n), lambda i: (0, i)),        # x^T tile, lane-dense
                pl.BlockSpec((out_dim, 1), lambda i: (0, 0)),       # labels, resident
            ],
            out_specs=pl.BlockSpec((out_dim, tile_n), lambda i: (0, i)),
        ),
        compiler_params=pltpu.CompilerParams(dimension_semantics=("parallel",)),
    )(x_t, labels_col)

    # Un-pad and return in the PyTorch (N, OUT_DIM) float32 layout.
    return out_t[:, :N].T


if __name__ == "__main__":
    key = jax.random.PRNGKey(0)
    N, D = 16, len(TRAIN_LABELS)

    # Build x column-by-column so each feature stays within [0, num_poss_labels[i]).
    cols = []
    for i in range(D):
        key, sub = jax.random.split(key)
        cols.append(jax.random.randint(sub, (N,), 0, NUM_POSS_LABELS[i], dtype=jnp.int32))
    x = jnp.stack(cols, axis=1)                                   # (16, 4) int32

    # Flattened labels for used dims (the "parameters" derived from one_hot tables).
    labels_flat = jnp.array(
        [lab for i in USED_DIMS for lab in TRAIN_LABELS[i]], dtype=jnp.int32)  # (9,)

    out = jax.block_until_ready(one_hot_encode(x, labels_flat))

    # Pure-JAX reference reproducing torch.cat([one_hot[i][x[:, i]]], dim=1).
    ref_pieces = []
    for i in USED_DIMS:
        tbl = jnp.zeros((NUM_POSS_LABELS[i], len(TRAIN_LABELS[i])), jnp.float32)
        tbl = tbl.at[jnp.array(TRAIN_LABELS[i]), jnp.arange(len(TRAIN_LABELS[i]))].set(1.0)
        ref_pieces.append(tbl[x[:, i]])
    ref = jnp.concatenate(ref_pieces, axis=1)

    assert out.shape == (N, OUT_DIM) and out.dtype == jnp.float32
    assert bool(jnp.array_equal(out, ref))
    print("KERNEL_OK")
</pallas_src>

<mosaic_0001>
module attributes {stable_mosaic.version = 11 : i64} {
  func.func @_onehot_kernel(%arg0: i32, %arg1: memref<4x128xi32, #tpu.memory_space<vmem>>, %arg2: memref<9x1xi32, #tpu.memory_space<vmem>>, %arg3: memref<9x128xf32, #tpu.memory_space<vmem>>) attributes {dimension_semantics = [#tpu.dimension_semantics<parallel>], iteration_bounds = array<i64: 1>, scalar_prefetch = 0 : i64, scratch_operands = 0 : i64, tpu.core_type = #tpu.core_type<tc>, window_params = [{transform_indices = @transform_0, window_bounds = array<i64: 4, 128>}, {pipeline_mode = #tpu.pipeline_mode<synchronous>, transform_indices = @transform_1, window_bounds = array<i64: 9, 1>}, {transform_indices = @transform_2, window_bounds = array<i64: 9, 128>}]} {
    %c0 = arith.constant 0 : index
    %c0_0 = arith.constant 0 : index
    %0 = vector.load %arg1[%c0, %c0_0] : memref<4x128xi32, #tpu.memory_space<vmem>>, vector<4x128xi32>
    %c0_1 = arith.constant 0 : index
    %c0_2 = arith.constant 0 : index
    %1 = vector.load %arg2[%c0_1, %c0_2] : memref<9x1xi32, #tpu.memory_space<vmem>>, vector<9x1xi32>
    %2 = vector.extract_strided_slice %0 {offsets = [0, 0], sizes = [1, 128], strides = [1, 1]} : vector<4x128xi32> to vector<1x128xi32>
    %3 = vector.extract_strided_slice %1 {offsets = [0, 0], sizes = [3, 1], strides = [1, 1]} : vector<9x1xi32> to vector<3x1xi32>
    %4 = vector.broadcast %2 : vector<1x128xi32> to vector<3x128xi32>
    %5 = vector.broadcast %3 : vector<3x1xi32> to vector<3x128xi32>
    %6 = arith.cmpi eq, %4, %5 : vector<3x128xi32>
    %7 = arith.extui %6 : vector<3x128xi1> to vector<3x128xi32>
    %8 = arith.sitofp %7 : vector<3x128xi32> to vector<3x128xf32>
    %9 = vector.extract_strided_slice %0 {offsets = [2, 0], sizes = [1, 128], strides = [1, 1]} : vector<4x128xi32> to vector<1x128xi32>
    %10 = vector.extract_strided_slice %1 {offsets = [3, 0], sizes = [2, 1], strides = [1, 1]} : vector<9x1xi32> to vector<2x1xi32>
    %11 = vector.broadcast %9 : vector<1x128xi32> to vector<2x128xi32>
    %12 = vector.broadcast %10 : vector<2x1xi32> to vector<2x128xi32>
    %13 = arith.cmpi eq, %11, %12 : vector<2x128xi32>
    %14 = arith.extui %13 : vector<2x128xi1> to vector<2x128xi32>
    %15 = arith.sitofp %14 : vector<2x128xi32> to vector<2x128xf32>
    %16 = vector.extract_strided_slice %0 {offsets = [3, 0], sizes = [1, 128], strides = [1, 1]} : vector<4x128xi32> to vector<1x128xi32>
    %17 = vector.extract_strided_slice %1 {offsets = [5, 0], sizes = [4, 1], strides = [1, 1]} : vector<9x1xi32> to vector<4x1xi32>
    %18 = vector.broadcast %16 : vector<1x128xi32> to vector<4x128xi32>
    %19 = vector.broadcast %17 : vector<4x1xi32> to vector<4x128xi32>
    %20 = arith.cmpi eq, %18, %19 : vector<4x128xi32>
    %21 = arith.extui %20 : vector<4x128xi1> to vector<4x128xi32>
    %22 = arith.sitofp %21 : vector<4x128xi32> to vector<4x128xf32>
    %23 = tpu.concatenate %8, %15, %22 in 0 : vector<3x128xf32>, vector<2x128xf32>, vector<4x128xf32> -> vector<9x128xf32>
    %c0_3 = arith.constant 0 : index
    %c0_4 = arith.constant 0 : index
    %24 = vector.load %arg3[%c0_3, %c0_4] : memref<9x128xf32, #tpu.memory_space<vmem>>, vector<9x128xf32>
    tpu.vector_store %arg3[%c0_3, %c0_4], %23 {strides = array<i32>} : memref<9x128xf32, #tpu.memory_space<vmem>>, vector<9x128xf32>,
    return
  }
  func.func @transform_0(%arg0: i32) -> (i32, i32) {
    %c0_i32 = arith.constant 0 : i32
    %c0_i32_0 = arith.constant 0 : i32
    return %c0_i32, %arg0 : i32, i32
  }
  func.func @transform_1(%arg0: i32) -> (i32, i32) {
    %c0_i32 = arith.constant 0 : i32
    %c0_i32_0 = arith.constant 0 : i32
    %c0_i32_1 = arith.constant 0 : i32
    return %c0_i32, %c0_i32_0 : i32, i32
  }
  func.func @transform_2(%arg0: i32) -> (i32, i32) {
    %c0_i32 = arith.constant 0 : i32
    %c0_i32_0 = arith.constant 0 : i32
    return %c0_i32, %arg0 : i32, i32
  }
}

</mosaic_0001>

<llo_original>
// kernel: tpu_custom_call.1
$region0: #{tpu_custom_call.1}
  #allocation0 [shape = 'u32[]', space=smem, size = 0x4, offset = 0x4, fixed_abs, tag = 'smem constant byte address 0x4 - core index']
  #allocation1 [shape = 'u32[72,128]{1,0:T(1,128)}', space=vmem, size = 0x9000, scoped, tag = 'internal scratch']
  %s0 = inlined_call_operand.vmem [shape: s32[4,128], index: 0, kind: input, shape index: {}]
  %s1 = inlined_call_operand.vmem [shape: s32[9,1], index: 1, kind: input, shape index: {}]
  %s2 = inlined_call_operand.hbm [shape: f32[9,128], index: 2, kind: output, shape index: {}]
  %s3 = sld [smem:[#allocation0]]
  $region18: #{tpu_custom_call.1} parent=0
    _
  %s5 = ssub.s32 1, %s3
  %s6 = scalar_select 0, %s5, %s3
  $region1: #{tpu_custom_call.1} parent=0
    #allocation2 [shape = 'u8[8192]{0}', space=vmem, size = 0x2000, scoped, tag = 'output window, operand 0, single buffered']
    #allocation3 [shape = 's32[1]{0}', space=sflag, size = 0x4, scoped, tag = 'scoped memory for tpu_custom_call.1']
    %7 = vsyncpa [#allocation3], 0
    // Predicated region
    $region2: #{tpu_custom_call.1} parent=1 // pred_check
      _
    $region3: #{tpu_custom_call.1} parent=1 // pred_check_branch
      %9 = sbr.rel (0) target = $region5
    $region4: #{tpu_custom_call.1} parent=1 // pred_region
      _
    $region5: #{tpu_custom_call.1} parent=1 // pred_fallthru
      _
    // Predicated region
    $region6: #{tpu_custom_call.1} parent=1 // pred_check
      _
    $region7: #{tpu_custom_call.1} parent=1 // pred_check_branch
      %11 = sbr.rel (0) target = $region9
    $region8: #{tpu_custom_call.1} parent=1 // pred_region
      _
    $region9: #{tpu_custom_call.1} parent=1 // pred_fallthru
      _
    %v12 = vld [vmem:[%s0] sm:$0xf]
    %v13 = vld [vmem:[%s1] sm:$0xff]
    %v14 = vld [vmem:[%s1 + $0x8] sm:$0x1]
    %v15 = vperm.slane %v12, 0
    %16 = vset.pattern.permute.xlu0 0
    %17 = vperm.xlu0 %16, %v13
    %v18 = vpop.permute.xlu0 %17
    %vm19 = vcmp.eq.s32.totalorder %v15, %v18
    %v20 = vsel %vm19, 1, 0
    %v21 = vcvt.s32.f32 %v20
    %v22 = vperm.slane %v12, 2
    %vm23 = vcmp.eq.s32.totalorder %v22, %v18
    %v24 = vsel %vm23, 1, 0
    %v25 = vcvt.s32.f32 %v24
    %v26 = vperm.slane %v12, 3
    %27 = vset.pattern.permute.xlu0 0
    %28 = vperm.xlu0 %27, %v14
    %v29 = vpop.permute.xlu0 %28
    %vm30 = vcmp.eq.s32.totalorder %v26, %v18
    %vm31 = vcmp.eq.s32.totalorder %v26, %v29
    %v32 = vsel %vm30, 1, 0
    %v33 = vsel %vm31, 1, 0
    %v34 = vcvt.s32.f32 %v32
    %v35 = vcvt.s32.f32 %v33
    %vm36 = vcmask 1042432
    %v37 = vsel %vm36, %v21, %v25
    %vm38 = vcmask 1044480
    %v39 = vsel %vm38, %v37, %v34
    %40 = vst [vmem:[#allocation2] sm:$0xff] %v39
    %41 = vst [vmem:[#allocation2 + $0x8] sm:$0x1] %v35
    // Predicated region
    $region10: #{tpu_custom_call.1} parent=1 // pred_check
      _
    $region11: #{tpu_custom_call.1} parent=1 // pred_check_branch
      %43 = sbr.rel (0) target = $region13
    $region12: #{tpu_custom_call.1} parent=1 // pred_region
      %45 = vsyncadd [#allocation3], 0
      %s46 = sshll.u32 [#allocation2], 4
      %s47 = int_to_ptr.vmem [resolvable:$true] %s46
      %s48 = sshll.u32 %s2, 4
      %s49 = int_to_ptr.hbm [resolvable:$true] %s48
      %54 = dma.vmem_to_hbm [thread:$0]  %s47, 256, %s49, [#allocation3], 128, 128, 8
    $region13: #{tpu_custom_call.1} parent=1 // pred_fallthru
      _
    // Predicated region
    $region14: #{tpu_custom_call.1} parent=1 // pred_check
      _
    $region15: #{tpu_custom_call.1} parent=1 // pred_check_branch
      %56 = sbr.rel (0) target = $region17
    $region16: #{tpu_custom_call.1} parent=1 // pred_region
      %58 = dma.done [#allocation3], 256
    $region17: #{tpu_custom_call.1} parent=1 // pred_fallthru
      _
    %59 = vsyncpa [#allocation3], 1

</llo_original>
